<compile_context>
chip_gen: v5e
topology: v5e:2x2
jax: 0.10.0
libtpu: 0.0.40
codegen_flags: <defaults>
</compile_context>

<pallas_src>
import jax
import jax.numpy as jnp
from jax.experimental import pallas as pl
from jax.experimental.pallas import tpu as pltpu


def _round_up(a, m):
    return (a + m - 1) // m * m


def _vmem_limit_bytes():
    """Scoped-VMEM limit derived from the chip (64 MiB on v7x, 128 MiB on v5e/v6e)."""
    try:
        phys = int(pltpu.get_tpu_info().vmem_capacity_bytes)
    except Exception:
        phys = 64 * 1024 * 1024  # conservative fallback: v7x per-TensorCore VMEM
    return max(32 * 1024 * 1024, min(phys * 3 // 4, 100 * 1024 * 1024))


def _choose_tb(B, Lp, max_r):
    """Largest legal batch tile that fits the VMEM budget; prefer >=2 grid blocks."""
    cands = [tb for tb in range(1, B + 1)
             if B % tb == 0 and (tb == B or (tb * Lp) % 128 == 0)]
    fitting = [tb for tb in cands if tb * Lp <= max_r]
    multi = [tb for tb in fitting if B // tb >= 2]
    if multi:
        return max(multi)
    if fitting:
        return max(fitting)
    return min(cands)


def cnn_forward(x, params, use_bf16_mxu=False):
    """x: (B, input_dim) f32. params in PyTorch shapes."""
    w1, b1, w2, b2, wfc, bfc = params
    B, L = x.shape
    Lp = _round_up(L, 8)          # pad positions so the (R,32)->(TB,Lp,32) view is tile-aligned

    vmem_limit = _vmem_limit_bytes()
    per_pos_bytes = 1600          # ~lane-padded live vector bytes per (example, position)
    max_r = max(Lp, (vmem_limit * 3 // 5) // per_pos_bytes)
    TB = _choose_tb(B, Lp, max_r)
    n_blocks = B // TB
    R = TB * Lp
    OW = _round_up(TB, 128)       # lane-dense output tile width

    # ---- one-time parameter / input relayout (pure data movement, outside the kernel) ----
    x_pad = x if Lp == L else jnp.pad(x, ((0, 0), (0, Lp - L)))
    x_row = x_pad.reshape(1, B * Lp)                        # lane r = b*Lp + t

    w1k = w1[:, 0, :]                                       # (16, 3)  [c, k]
    b1c = b1[:, None]                                       # (16, 1)
    w2m = jnp.transpose(w2, (0, 2, 1)).reshape(32, 48)      # (32, 48) col = k*16 + ci
    b2c = b2[:, None]                                       # (32, 1)
    wfc2 = jnp.transpose(wfc.reshape(32, L), (1, 0))        # (L, 32)  torch flat index c*L+t
    if Lp != L:
        wfc2 = jnp.pad(wfc2, ((0, Lp - L), (0, 0)))         # padded positions get weight 0
    bfc2 = bfc.reshape(1, 1)

    def kernel(x_ref, w1_ref, b1_ref, w2_ref, b2_ref, wfc_ref, bfc_ref, o_ref):
        xrow = x_ref[...]                                   # (1, R)

        # In-kernel boundary masks (review item 3): t = lane % Lp, built by tiling a
        # (1, Lp) iota-compare TB times (cheap VPU filler, no HBM/VMEM operands).
        t = jax.lax.broadcasted_iota(jnp.int32, (1, Lp), 1)

        def lane_mask(cond):
            m = cond.astype(jnp.float32)                    # (1, Lp)
            return jnp.concatenate([m] * TB, axis=1) if TB > 1 else m

        m_first = lane_mask(t != 0)        # kills the t-1 tap at t == 0 (and roll wrap)
        m_last = lane_mask(t != Lp - 1)    # kills the t+1 tap at t == Lp-1 (and roll wrap)

        # ---- conv1 (1 -> 16, k=3, pad=1) + ReLU: lane rolls + VPU outer products
        xm = pltpu.roll(xrow, shift=1, axis=1) * m_first        # x[b, t-1]
        xpv = pltpu.roll(xrow, shift=R - 1, axis=1) * m_last    # x[b, t+1]  (roll by -1)
        w1c = w1_ref[...]                                       # (16, 3)
        h1 = b1_ref[...] + w1c[:, 0:1] * xm + w1c[:, 1:2] * xrow + w1c[:, 2:3] * xpv
        h1 = jnp.maximum(h1, 0.0)                               # (16, R)
        if Lp != L:
            h1 = h1 * lane_mask(t < L)      # zero conv1 output at padded positions

        # ---- conv2 (16 -> 32, k=3, pad=1) + ReLU: single (32,48)@(48,R) MXU matmul
        h1m = pltpu.roll(h1, shift=1, axis=1) * m_first
        h1p = pltpu.roll(h1, shift=R - 1, axis=1) * m_last
        h48 = jnp.concatenate([h1m, h1, h1p], axis=0)           # (48, R), row = k*16 + ci
        w2c = w2_ref[...]
        if use_bf16_mxu:
            # v6e/v7x: native-bf16 MXU operands with f32 accumulation (do NOT use int8 on v7x).
            h2 = jnp.dot(w2c.astype(jnp.bfloat16), h48.astype(jnp.bfloat16),
                         preferred_element_type=jnp.float32)
        else:
            h2 = jnp.dot(w2c, h48, preferred_element_type=jnp.float32)
        h2 = jnp.maximum(h2 + b2_ref[...], 0.0)                 # (32, R)

        # ---- fc (32*L -> 1): per-example weighted sum. No segment matrix, no tiled wfc:
        # transpose to (R, 32), view per example as (TB, Lp, 32), broadcast the single
        # (Lp, 32) weight, then reduce.
        u = jnp.transpose(h2).reshape(TB, Lp, 32) * wfc_ref[...][None]   # (TB, Lp, 32)
        z = jnp.sum(jnp.sum(u, axis=1), axis=1, keepdims=True) + bfc_ref[...]  # (TB, 1)

        # ---- softplus matching torch defaults (beta=1, threshold=20)
        y = jnp.where(z > 20.0, z, jnp.log1p(jnp.exp(jnp.minimum(z, 20.0))))

        # ---- lane-dense, full-tile output store (review item 11)
        y_row = jnp.transpose(y)                                # (1, TB)
        if OW > TB:
            y_row = jnp.concatenate(
                [y_row, jnp.zeros((1, OW - TB), jnp.float32)], axis=1)
        tile = jnp.concatenate([y_row, jnp.zeros((7, OW), jnp.float32)], axis=0)
        o_ref[...] = tile.astype(o_ref.dtype)

    def _bcast(arr):
        nd = arr.ndim
        return pl.BlockSpec(arr.shape, lambda i, _nd=nd: (0,) * _nd)

    raw = pl.pallas_call(
        kernel,
        out_shape=jax.ShapeDtypeStruct((n_blocks * 8, OW), jnp.float32),
        grid=(n_blocks,),
        in_specs=[
            pl.BlockSpec((1, R), lambda i: (0, i)),             # lane-dense x row block
            _bcast(w1k), _bcast(b1c), _bcast(w2m), _bcast(b2c),
            _bcast(wfc2), _bcast(bfc2),
        ],
        out_specs=pl.BlockSpec((8, OW), lambda i: (i, 0)),
        compiler_params=pltpu.CompilerParams(
            dimension_semantics=("parallel",),
            vmem_limit_bytes=vmem_limit,
        ),
    )(x_row, w1k, b1c, w2m, b2c, wfc2, bfc2)

    return raw.reshape(n_blocks, 8, OW)[:, 0, :TB].reshape(B, 1)


def ref_forward(x, params):
    """Pure-JAX reference following the PyTorch NCL semantics literally."""
    w1, b1, w2, b2, wfc, bfc = params
    B, L = x.shape
    xc = x[:, None, :]                                      # (B,1,L)
    xp = jnp.pad(xc, ((0, 0), (0, 0), (1, 1)))
    h1 = sum(jnp.einsum('bct,oc->bot', xp[:, :, k:k + L], w1[:, :, k]) for k in range(3))
    h1 = jnp.maximum(h1 + b1[None, :, None], 0.0)           # (B,16,L)
    h1p = jnp.pad(h1, ((0, 0), (0, 0), (1, 1)))
    h2 = sum(jnp.einsum('bct,oc->bot', h1p[:, :, k:k + L], w2[:, :, k]) for k in range(3))
    h2 = jnp.maximum(h2 + b2[None, :, None], 0.0)           # (B,32,L)
    z = h2.reshape(B, -1) @ wfc.T + bfc                     # (B,1)
    return jax.nn.softplus(z)


def init_params(key, input_dim):
    k1, k2, k3, k4, k5, k6 = jax.random.split(key, 6)
    w1 = jax.random.normal(k1, (16, 1, 3), jnp.float32) * 0.3
    b1 = jax.random.normal(k2, (16,), jnp.float32) * 0.1
    w2 = jax.random.normal(k3, (32, 16, 3), jnp.float32) * 0.1
    b2 = jax.random.normal(k4, (32,), jnp.float32) * 0.1
    wfc = jax.random.normal(k5, (1, 32 * input_dim), jnp.float32) * 0.05
    bfc = jax.random.normal(k6, (1,), jnp.float32) * 0.1
    return (w1, b1, w2, b2, wfc, bfc)


if __name__ == "__main__":
    B, L = 4, 16  # batch, input_dim
    key = jax.random.PRNGKey(0)
    kx, kp = jax.random.split(key)
    x = jax.random.normal(kx, (B, L), jnp.float32)
    params = init_params(kp, L)

    out = jax.block_until_ready(cnn_forward(x, params))
    ref = jax.block_until_ready(ref_forward(x, params))

    assert out.shape == (B, 1)
    assert jnp.allclose(out, ref, rtol=1e-4, atol=1e-4), (out, ref)

    print("KERNEL_OK")
</pallas_src>

<mosaic_0001>
module attributes {stable_mosaic.version = 11 : i64} {
  func.func @kernel(%arg0: i32, %arg1: memref<1x64xf32, #tpu.memory_space<vmem>>, %arg2: memref<16x3xf32, #tpu.memory_space<vmem>>, %arg3: memref<16x1xf32, #tpu.memory_space<vmem>>, %arg4: memref<32x48xf32, #tpu.memory_space<vmem>>, %arg5: memref<32x1xf32, #tpu.memory_space<vmem>>, %arg6: memref<16x32xf32, #tpu.memory_space<vmem>>, %arg7: memref<1x1xf32, #tpu.memory_space<vmem>>, %arg8: memref<8x128xf32, #tpu.memory_space<vmem>>) attributes {dimension_semantics = [#tpu.dimension_semantics<parallel>], iteration_bounds = array<i64: 1>, scalar_prefetch = 0 : i64, scratch_operands = 0 : i64, tpu.core_type = #tpu.core_type<tc>, window_params = [{transform_indices = @transform_0, window_bounds = array<i64: 1, 64>}, {pipeline_mode = #tpu.pipeline_mode<synchronous>, transform_indices = @transform_1, window_bounds = array<i64: 16, 3>}, {pipeline_mode = #tpu.pipeline_mode<synchronous>, transform_indices = @transform_2, window_bounds = array<i64: 16, 1>}, {pipeline_mode = #tpu.pipeline_mode<synchronous>, transform_indices = @transform_3, window_bounds = array<i64: 32, 48>}, {pipeline_mode = #tpu.pipeline_mode<synchronous>, transform_indices = @transform_4, window_bounds = array<i64: 32, 1>}, {pipeline_mode = #tpu.pipeline_mode<synchronous>, transform_indices = @transform_5, window_bounds = array<i64: 16, 32>}, {pipeline_mode = #tpu.pipeline_mode<synchronous>, transform_indices = @transform_6, window_bounds = array<i64: 1, 1>}, {transform_indices = @transform_7, window_bounds = array<i64: 8, 128>}]} {
    %c0 = arith.constant 0 : index
    %c0_0 = arith.constant 0 : index
    %0 = vector.load %arg1[%c0, %c0_0] : memref<1x64xf32, #tpu.memory_space<vmem>>, vector<1x64xf32>
    %1 = tpu.iota {dimensions = array<i32: 1>} : vector<1x16xi32>
    %c0_i32 = arith.constant 0 : i32
    %2 = vector.broadcast %c0_i32 : i32 to vector<1x16xi32>
    %3 = arith.cmpi ne, %1, %2 : vector<1x16xi32>
    %4 = arith.extui %3 : vector<1x16xi1> to vector<1x16xi32>
    %5 = arith.sitofp %4 : vector<1x16xi32> to vector<1x16xf32>
    %6 = tpu.concatenate %5, %5, %5, %5 in 1 : vector<1x16xf32>, vector<1x16xf32>, vector<1x16xf32>, vector<1x16xf32> -> vector<1x64xf32>
    %c15_i32 = arith.constant 15 : i32
    %7 = vector.broadcast %c15_i32 : i32 to vector<1x16xi32>
    %8 = arith.cmpi ne, %1, %7 : vector<1x16xi32>
    %9 = arith.extui %8 : vector<1x16xi1> to vector<1x16xi32>
    %10 = arith.sitofp %9 : vector<1x16xi32> to vector<1x16xf32>
    %11 = tpu.concatenate %10, %10, %10, %10 in 1 : vector<1x16xf32>, vector<1x16xf32>, vector<1x16xf32>, vector<1x16xf32> -> vector<1x64xf32>
    %c1_i32 = arith.constant 1 : i32
    %12 = tpu.dynamic_rotate %0 by %c1_i32 dim 1 : vector<1x64xf32>, i32 -> vector<1x64xf32>
    %13 = arith.mulf %12, %6 : vector<1x64xf32>
    %c63_i32 = arith.constant 63 : i32
    %14 = tpu.dynamic_rotate %0 by %c63_i32 dim 1 : vector<1x64xf32>, i32 -> vector<1x64xf32>
    %15 = arith.mulf %14, %11 : vector<1x64xf32>
    %c0_1 = arith.constant 0 : index
    %c0_2 = arith.constant 0 : index
    %16 = vector.load %arg2[%c0_1, %c0_2] : memref<16x3xf32, #tpu.memory_space<vmem>>, vector<16x3xf32>
    %c0_3 = arith.constant 0 : index
    %c0_4 = arith.constant 0 : index
    %17 = vector.load %arg3[%c0_3, %c0_4] : memref<16x1xf32, #tpu.memory_space<vmem>>, vector<16x1xf32>
    %18 = vector.extract_strided_slice %16 {offsets = [0, 0], sizes = [16, 1], strides = [1, 1]} : vector<16x3xf32> to vector<16x1xf32>
    %19 = vector.broadcast %18 : vector<16x1xf32> to vector<16x64xf32>
    %20 = vector.broadcast %13 : vector<1x64xf32> to vector<16x64xf32>
    %21 = arith.mulf %19, %20 : vector<16x64xf32>
    %22 = vector.broadcast %17 : vector<16x1xf32> to vector<16x64xf32>
    %23 = arith.addf %22, %21 : vector<16x64xf32>
    %24 = vector.extract_strided_slice %16 {offsets = [0, 1], sizes = [16, 1], strides = [1, 1]} : vector<16x3xf32> to vector<16x1xf32>
    %25 = vector.broadcast %24 : vector<16x1xf32> to vector<16x64xf32>
    %26 = vector.broadcast %0 : vector<1x64xf32> to vector<16x64xf32>
    %27 = arith.mulf %25, %26 : vector<16x64xf32>
    %28 = arith.addf %23, %27 : vector<16x64xf32>
    %29 = vector.extract_strided_slice %16 {offsets = [0, 2], sizes = [16, 1], strides = [1, 1]} : vector<16x3xf32> to vector<16x1xf32>
    %30 = vector.broadcast %29 : vector<16x1xf32> to vector<16x64xf32>
    %31 = vector.broadcast %15 : vector<1x64xf32> to vector<16x64xf32>
    %32 = arith.mulf %30, %31 : vector<16x64xf32>
    %33 = arith.addf %28, %32 : vector<16x64xf32>
    %cst = arith.constant 0.000000e+00 : f32
    %34 = vector.broadcast %cst : f32 to vector<16x64xf32>
    %35 = arith.maximumf %33, %34 : vector<16x64xf32>
    %c1_i32_5 = arith.constant 1 : i32
    %36 = tpu.dynamic_rotate %35 by %c1_i32_5 dim 1 : vector<16x64xf32>, i32 -> vector<16x64xf32>
    %37 = vector.broadcast %6 : vector<1x64xf32> to vector<16x64xf32>
    %38 = arith.mulf %36, %37 : vector<16x64xf32>
    %c63_i32_6 = arith.constant 63 : i32
    %39 = tpu.dynamic_rotate %35 by %c63_i32_6 dim 1 : vector<16x64xf32>, i32 -> vector<16x64xf32>
    %40 = vector.broadcast %11 : vector<1x64xf32> to vector<16x64xf32>
    %41 = arith.mulf %39, %40 : vector<16x64xf32>
    %42 = tpu.concatenate %38, %35, %41 in 0 : vector<16x64xf32>, vector<16x64xf32>, vector<16x64xf32> -> vector<48x64xf32>
    %c0_7 = arith.constant 0 : index
    %c0_8 = arith.constant 0 : index
    %43 = vector.load %arg4[%c0_7, %c0_8] : memref<32x48xf32, #tpu.memory_space<vmem>>, vector<32x48xf32>
    %cst_9 = arith.constant dense<0.000000e+00> : vector<32x64xf32>
    %44 = tpu.matmul %43, %42, %cst_9 {dimension_numbers = #tpu.dot_dimension_numbers<[1], [0], [0], [1], [0, 0, 1, 1], [], []>} : vector<32x48xf32>, vector<48x64xf32>, vector<32x64xf32> -> vector<32x64xf32>
    %c0_10 = arith.constant 0 : index
    %c0_11 = arith.constant 0 : index
    %45 = vector.load %arg5[%c0_10, %c0_11] : memref<32x1xf32, #tpu.memory_space<vmem>>, vector<32x1xf32>
    %46 = vector.broadcast %45 : vector<32x1xf32> to vector<32x64xf32>
    %47 = arith.addf %44, %46 : vector<32x64xf32>
    %cst_12 = arith.constant 0.000000e+00 : f32
    %48 = vector.broadcast %cst_12 : f32 to vector<32x64xf32>
    %49 = arith.maximumf %47, %48 : vector<32x64xf32>
    %50 = tpu.transpose %49, [1, 0] : vector<32x64xf32> -> vector<64x32xf32>
    %51 = vector.shape_cast %50 : vector<64x32xf32> to vector<4x16x32xf32>
    %c0_13 = arith.constant 0 : index
    %c0_14 = arith.constant 0 : index
    %52 = vector.load %arg6[%c0_13, %c0_14] : memref<16x32xf32, #tpu.memory_space<vmem>>, vector<16x32xf32>
    %53 = vector.shape_cast %52 : vector<16x32xf32> to vector<1x16x32xf32>
    %54 = vector.broadcast %53 : vector<1x16x32xf32> to vector<4x16x32xf32>
    %55 = arith.mulf %51, %54 : vector<4x16x32xf32>
    %cst_15 = arith.constant dense<0.000000e+00> : vector<4x32xf32>
    %56 = vector.multi_reduction <add>, %55, %cst_15 [1] : vector<4x16x32xf32> to vector<4x32xf32>
    %cst_16 = arith.constant dense<0.000000e+00> : vector<4xf32>
    %57 = vector.multi_reduction <add>, %56, %cst_16 [1] : vector<4x32xf32> to vector<4xf32>
    %58 = vector.shape_cast %57 : vector<4xf32> to vector<4x1xf32>
    %c0_17 = arith.constant 0 : index
    %c0_18 = arith.constant 0 : index
    %59 = vector.load %arg7[%c0_17, %c0_18] : memref<1x1xf32, #tpu.memory_space<vmem>>, vector<1x1xf32>
    %60 = vector.broadcast %59 : vector<1x1xf32> to vector<4x1xf32>
    %61 = arith.addf %58, %60 : vector<4x1xf32>
    %cst_19 = arith.constant 2.000000e+01 : f32
    %62 = vector.broadcast %cst_19 : f32 to vector<4x1xf32>
    %63 = arith.cmpf ogt, %61, %62 : vector<4x1xf32>
    %cst_20 = arith.constant 2.000000e+01 : f32
    %64 = vector.broadcast %cst_20 : f32 to vector<4x1xf32>
    %65 = arith.minimumf %61, %64 : vector<4x1xf32>
    %66 = math.exp %65 : vector<4x1xf32>
    %67 = math.log1p %66 : vector<4x1xf32>
    %68 = arith.select %63, %61, %67 : vector<4x1xi1>, vector<4x1xf32>
    %69 = tpu.transpose %68, [1, 0] : vector<4x1xf32> -> vector<1x4xf32>
    %cst_21 = arith.constant 0.000000e+00 : f32
    %70 = vector.broadcast %cst_21 : f32 to vector<1x124xf32>
    %71 = tpu.concatenate %69, %70 in 1 : vector<1x4xf32>, vector<1x124xf32> -> vector<1x128xf32>
    %cst_22 = arith.constant 0.000000e+00 : f32
    %72 = vector.broadcast %cst_22 : f32 to vector<7x128xf32>
    %73 = tpu.concatenate %71, %72 in 0 : vector<1x128xf32>, vector<7x128xf32> -> vector<8x128xf32>
    %c0_23 = arith.constant 0 : index
    %c0_24 = arith.constant 0 : index
    %74 = vector.load %arg8[%c0_23, %c0_24] : memref<8x128xf32, #tpu.memory_space<vmem>>, vector<8x128xf32>
    tpu.vector_store %arg8[%c0_23, %c0_24], %73 {strides = array<i32>} : memref<8x128xf32, #tpu.memory_space<vmem>>, vector<8x128xf32>,
    return
  }
  func.func @transform_0(%arg0: i32) -> (i32, i32) {
    %c0_i32 = arith.constant 0 : i32
    %c0_i32_0 = arith.constant 0 : i32
    return %c0_i32, %arg0 : i32, i32
  }
  func.func @transform_1(%arg0: i32) -> (i32, i32) {
    %c0_i32 = arith.constant 0 : i32
    %c0_i32_0 = arith.constant 0 : i32
    %c0_i32_1 = arith.constant 0 : i32
    return %c0_i32, %c0_i32_0 : i32, i32
  }
  func.func @transform_2(%arg0: i32) -> (i32, i32) {
    %c0_i32 = arith.constant 0 : i32
    %c0_i32_0 = arith.constant 0 : i32
    %c0_i32_1 = arith.constant 0 : i32
    return %c0_i32, %c0_i32_0 : i32, i32
  }
  func.func @transform_3(%arg0: i32) -> (i32, i32) {
    %c0_i32 = arith.constant 0 : i32
    %c0_i32_0 = arith.constant 0 : i32
    %c0_i32_1 = arith.constant 0 : i32
    return %c0_i32, %c0_i32_0 : i32, i32
  }
  func.func @transform_4(%arg0: i32) -> (i32, i32) {
    %c0_i32 = arith.constant 0 : i32
    %c0_i32_0 = arith.constant 0 : i32
    %c0_i32_1 = arith.constant 0 : i32
    return %c0_i32, %c0_i32_0 : i32, i32
  }
  func.func @transform_5(%arg0: i32) -> (i32, i32) {
    %c0_i32 = arith.constant 0 : i32
    %c0_i32_0 = arith.constant 0 : i32
    %c0_i32_1 = arith.constant 0 : i32
    return %c0_i32, %c0_i32_0 : i32, i32
  }
  func.func @transform_6(%arg0: i32) -> (i32, i32) {
    %c0_i32 = arith.constant 0 : i32
    %c0_i32_0 = arith.constant 0 : i32
    %c0_i32_1 = arith.constant 0 : i32
    return %c0_i32, %c0_i32_0 : i32, i32
  }
  func.func @transform_7(%arg0: i32) -> (i32, i32) {
    %c0_i32 = arith.constant 0 : i32
    %c0_i32_0 = arith.constant 0 : i32
    return %arg0, %c0_i32 : i32, i32
  }
}

</mosaic_0001>

<llo_original>
// kernel: tpu_custom_call.1
$region0: #{tpu_custom_call.1}
  #allocation0 [shape = 'u32[]', space=smem, size = 0x4, offset = 0x4, fixed_abs, tag = 'smem constant byte address 0x4 - core index']
  #allocation1 [shape = 'u32[72,128]{1,0:T(1,128)}', space=vmem, size = 0x9000, scoped, tag = 'internal scratch']
  #allocation2 [shape = 'f32[1,1]{1,0:T(1,128)S(1)}', space=vmem, size = 0x200, scoped, tag = 'scoped memory for tpu_custom_call.1']
  %s0 = inlined_call_operand.vmem [shape: f32[1,64], index: 0, kind: input, shape index: {}]
  %s1 = inlined_call_operand.vmem [shape: f32[16,3], index: 1, kind: input, shape index: {}]
  %s2 = inlined_call_operand.vmem [shape: f32[16,1], index: 2, kind: input, shape index: {}]
  %s3 = inlined_call_operand.vmem [shape: f32[32,48], index: 3, kind: input, shape index: {}]
  %s4 = inlined_call_operand.vmem [shape: f32[32,1], index: 4, kind: input, shape index: {}]
  %s5 = inlined_call_operand.vmem [shape: f32[16,32], index: 5, kind: input, shape index: {}]
  %s6 = inlined_call_operand.<no memory space> [shape: f32[1,1], index: 6, kind: input, shape index: {}]
  %s7 = inlined_call_operand.hbm [shape: f32[8,128], index: 7, kind: output, shape index: {}]
  %s8 = sld [smem:[#allocation0]]
  $region38: #{tpu_custom_call.1} parent=0
    _
  %s10 = ssub.s32 1, %s8
  %s11 = scalar_select 0, %s10, %s8
  %v12 = vstv %s6
  %13 = vst [vmem:[#allocation2] sm:$0x1] %v12
  $region1: #{tpu_custom_call.1} parent=0
    #allocation3 [shape = 'u8[4096]{0}', space=vmem, size = 0x1000, scoped, tag = 'output window, operand 0, single buffered']
    #allocation4 [shape = 's32[1]{0}', space=sflag, size = 0x4, scoped, tag = 'scoped memory for tpu_custom_call.1']
    %14 = vsyncpa [#allocation4], 0
    // Predicated region
    $region2: #{tpu_custom_call.1} parent=1 // pred_check
      _
    $region3: #{tpu_custom_call.1} parent=1 // pred_check_branch
      %16 = sbr.rel (0) target = $region5
    $region4: #{tpu_custom_call.1} parent=1 // pred_region
      _
    $region5: #{tpu_custom_call.1} parent=1 // pred_fallthru
      _
    // Predicated region
    $region6: #{tpu_custom_call.1} parent=1 // pred_check
      _
    $region7: #{tpu_custom_call.1} parent=1 // pred_check_branch
      %18 = sbr.rel (0) target = $region9
    $region8: #{tpu_custom_call.1} parent=1 // pred_region
      _
    $region9: #{tpu_custom_call.1} parent=1 // pred_fallthru
      _
    // Predicated region
    $region10: #{tpu_custom_call.1} parent=1 // pred_check
      _
    $region11: #{tpu_custom_call.1} parent=1 // pred_check_branch
      %20 = sbr.rel (0) target = $region13
    $region12: #{tpu_custom_call.1} parent=1 // pred_region
      _
    $region13: #{tpu_custom_call.1} parent=1 // pred_fallthru
      _
    // Predicated region
    $region14: #{tpu_custom_call.1} parent=1 // pred_check
      _
    $region15: #{tpu_custom_call.1} parent=1 // pred_check_branch
      %22 = sbr.rel (0) target = $region17
    $region16: #{tpu_custom_call.1} parent=1 // pred_region
      _
    $region17: #{tpu_custom_call.1} parent=1 // pred_fallthru
      _
    // Predicated region
    $region18: #{tpu_custom_call.1} parent=1 // pred_check
      _
    $region19: #{tpu_custom_call.1} parent=1 // pred_check_branch
      %24 = sbr.rel (0) target = $region21
    $region20: #{tpu_custom_call.1} parent=1 // pred_region
      _
    $region21: #{tpu_custom_call.1} parent=1 // pred_fallthru
      _
    // Predicated region
    $region22: #{tpu_custom_call.1} parent=1 // pred_check
      _
    $region23: #{tpu_custom_call.1} parent=1 // pred_check_branch
      %26 = sbr.rel (0) target = $region25
    $region24: #{tpu_custom_call.1} parent=1 // pred_region
      _
    $region25: #{tpu_custom_call.1} parent=1 // pred_fallthru
      _
    // Predicated region
    $region26: #{tpu_custom_call.1} parent=1 // pred_check
      _
    $region27: #{tpu_custom_call.1} parent=1 // pred_check_branch
      %28 = sbr.rel (0) target = $region29
    $region28: #{tpu_custom_call.1} parent=1 // pred_region
      _
    $region29: #{tpu_custom_call.1} parent=1 // pred_fallthru
      _
    %v29 = vld [vmem:[%s0] sm:$0x1]
    %v30 = vlaneseq
    %v31 = vand.u32 %v30, 127
    %vm32 = vcmp.ne.s32.totalorder %v31, 0
    %v33 = vsel %vm32, 1, 0
    %v34 = vcvt.s32.f32 %v33
    %36 = vrot.lane.b32.xlu0 %v34, 16
    %v37 = vpop.permute.xlu0 %36
    %39 = vrot.lane.b32.xlu0 %v34, 32
    %v40 = vpop.permute.xlu0 %39
    %42 = vrot.lane.b32.xlu0 %v34, 48
    %v43 = vpop.permute.xlu0 %42
    %vm45 = vcmask 130048
    %v46 = vsel %vm45, %v34, %v37
    %vm47 = vcmask 261120
    %v48 = vsel %vm47, %v46, %v40
    %vm49 = vcmask 392192
    %v50 = vsel %vm49, %v48, %v43
    %vm51 = vcmp.ne.s32.totalorder %v31, 15
    %v52 = vsel %vm51, 1, 0
    %v53 = vcvt.s32.f32 %v52
    %55 = vrot.lane.b32.xlu0 %v53, 16
    %v56 = vpop.permute.xlu0 %55
    %58 = vrot.lane.b32.xlu0 %v53, 32
    %v59 = vpop.permute.xlu0 %58
    %61 = vrot.lane.b32.xlu0 %v53, 48
    %v62 = vpop.permute.xlu0 %61
    %v64 = vsel %vm45, %v53, %v56
    %v65 = vsel %vm47, %v64, %v59
    %v66 = vsel %vm49, %v65, %v62
    %vm67 = vcmask 1048064
    %68 = vrot.lane.b32.xlu0 %v29, 64
    %v69 = vpop.permute.xlu0 %68
    %v70 = vsel %vm67, %v69, %v29
    %71 = vrot.lane.b32.xlu0 %v70, 64
    %v72 = vpop.permute.xlu0 %71
    %v73 = vsel %vm67, %v72, %v29
    %75 = vrot.lane.b32.xlu0 %v50, 63
    %v76 = vpop.permute.xlu0 %75
    %v78 = vmul.f32 %v73, %v76
    %80 = vrot.lane.b32.xlu0 %v66, 1
    %v81 = vpop.permute.xlu0 %80
    %v83 = vmul.f32 %v73, %v81
    %v84 = vld [vmem:[%s1] sm:$0xff]
    %v85 = vld [vmem:[%s1 + $0x8] sm:$0xff]
    %v86 = vld [vmem:[%s2] sm:$0xff]
    %v87 = vld [vmem:[%s2 + $0x8] sm:$0xff]
    %89 = vset.pattern.permute.xlu0 0
    %90 = vperm.xlu0 %89, %v84
    %v91 = vpop.permute.xlu0 %90
    %94 = vset.pattern.permute.xlu0 0
    %95 = vperm.xlu0 %94, %v85
    %v96 = vpop.permute.xlu0 %95
    %v98 = vperm.slane %v78, 0
    %v99 = vmul.f32 %v91, %v98
    %v100 = vmul.f32 %v96, %v98
    %102 = vset.pattern.permute.xlu0 0
    %103 = vperm.xlu0 %102, %v86
    %v104 = vpop.permute.xlu0 %103
    %107 = vset.pattern.permute.xlu0 0
    %108 = vperm.xlu0 %107, %v87
    %v109 = vpop.permute.xlu0 %108
    %v111 = vadd.f32 %v104, %v99
    %v112 = vadd.f32 %v109, %v100
    %113 = vset.pattern.permute.xlu0 1
    %114 = vperm.xlu0 %113, %v84
    %v115 = vpop.permute.xlu0 %114
    %117 = vset.pattern.permute.xlu0 1
    %118 = vperm.xlu0 %117, %v85
    %v119 = vpop.permute.xlu0 %118
    %v122 = vperm.slane %v29, 0
    %v124 = vmul.f32 %v115, %v122
    %v125 = vmul.f32 %v119, %v122
    %128 = vrot.lane.b32.xlu0 %v124, 63
    %v129 = vpop.permute.xlu0 %128
    %130 = vrot.lane.b32.xlu0 %v125, 63
    %v131 = vpop.permute.xlu0 %130
    %v134 = vadd.f32 %v111, %v129
    %v135 = vadd.f32 %v112, %v131
    %136 = vset.pattern.permute.xlu0 2
    %137 = vperm.xlu0 %136, %v84
    %v138 = vpop.permute.xlu0 %137
    %140 = vset.pattern.permute.xlu0 2
    %141 = vperm.xlu0 %140, %v85
    %v142 = vpop.permute.xlu0 %141
    %v144 = vperm.slane %v83, 0
    %v145 = vmul.f32 %v138, %v144
    %v146 = vmul.f32 %v142, %v144
    %149 = vrot.lane.b32.xlu0 %v145, 62
    %v150 = vpop.permute.xlu0 %149
    %151 = vrot.lane.b32.xlu0 %v146, 62
    %v152 = vpop.permute.xlu0 %151
    %v155 = vadd.f32 %v134, %v150
    %v156 = vadd.f32 %v135, %v152
    %v157 = vmax.f32 %v155, 0.0
    %v158 = vmax.f32 %v156, 0.0
    %161 = vrot.lane.b32.xlu0 %v157, 65
    %v162 = vpop.permute.xlu0 %161
    %163 = vrot.lane.b32.xlu0 %v158, 65
    %v164 = vpop.permute.xlu0 %163
    %167 = vrot.lane.b32.xlu0 %v162, 64
    %v168 = vpop.permute.xlu0 %167
    %v169 = vsel %vm67, %v168, %v162
    %170 = vrot.lane.b32.xlu0 %v164, 64
    %v171 = vpop.permute.xlu0 %170
    %v172 = vsel %vm67, %v171, %v164
    %173 = vrot.lane.b32.xlu0 %v169, 64
    %v174 = vpop.permute.xlu0 %173
    %175 = vrot.lane.b32.xlu0 %v172, 64
    %v176 = vpop.permute.xlu0 %175
    %v177 = vsel %vm67, %v174, %v162
    %v178 = vsel %vm67, %v176, %v164
    %v179 = vperm.slane %v50, 0
    %181 = vrot.lane.b32.xlu0 %v179, 63
    %v182 = vpop.permute.xlu0 %181
    %v184 = vmul.f32 %v177, %v182
    %v185 = vmul.f32 %v178, %v182
    %v186 = vperm.slane %v66, 0
    %188 = vrot.lane.b32.xlu0 %v186, 1
    %v189 = vpop.permute.xlu0 %188
    %v191 = vmul.f32 %v177, %v189
    %v192 = vmul.f32 %v178, %v189
    %195 = vrot.lane.b32.xlu0 %v191, 62
    %v196 = vpop.permute.xlu0 %195
    %197 = vrot.lane.b32.xlu0 %v192, 62
    %v198 = vpop.permute.xlu0 %197
    %v199 = vld [vmem:[%s3] sm:$0xff]
    %v200 = vld [vmem:[%s3 + $0x8] sm:$0xff]
    %v201 = vld [vmem:[%s3 + $0x10] sm:$0xff]
    %v202 = vld [vmem:[%s3 + $0x18] sm:$0xff]
    %v203 = vld [vmem:[%s4] sm:$0xff]
    %v204 = vld [vmem:[%s4 + $0x8] sm:$0xff]
    %v205 = vld [vmem:[%s4 + $0x10] sm:$0xff]
    %v206 = vld [vmem:[%s4 + $0x18] sm:$0xff]
    %208 = vset.pattern.permute.xlu0 0
    %209 = vperm.xlu0 %208, %v203
    %v210 = vpop.permute.xlu0 %209
    %213 = vset.pattern.permute.xlu0 0
    %214 = vperm.xlu0 %213, %v204
    %v215 = vpop.permute.xlu0 %214
    %218 = vset.pattern.permute.xlu0 0
    %219 = vperm.xlu0 %218, %v205
    %v220 = vpop.permute.xlu0 %219
    %223 = vset.pattern.permute.xlu0 0
    %224 = vperm.xlu0 %223, %v206
    %v225 = vpop.permute.xlu0 %224
    %229 = vrot.lane.b32.xlu0 %v184, 65
    %v230 = vpop.permute.xlu0 %229
    %231 = vrot.lane.b32.xlu0 %v185, 65
    %v232 = vpop.permute.xlu0 %231
    %233 = vrot.lane.b32.xlu0 %v196, 65
    %v234 = vpop.permute.xlu0 %233
    %235 = vrot.lane.b32.xlu0 %v198, 65
    %v236 = vpop.permute.xlu0 %235
    %v242 = vsel %vm49, %v199, 0
    %v245 = vsel %vm49, %v200, 0
    %v248 = vsel %vm49, %v201, 0
    %v251 = vsel %vm49, %v202, 0
    %253 = vmatpush.msra.mxu0 0.0
    %254 = vmatpush.msra.mxu0 0.0
    %255 = vmatpush.msra.mxu0 0.0
    %256 = vmatpush.msra.mxu0 0.0
    %257 = vmatpush.msra.mxu0 0.0
    %258 = vmatpush.msra.mxu0 0.0
    %259 = vmatpush.msra.mxu0 0.0
    %260 = vmatpush.msra.mxu0 0.0
    %261 = vmatpush.msra.mxu0 0.0
    %262 = vmatpush.msra.mxu0 0.0
    %263 = vmatpush.msra.mxu0 %v236
    %264 = vmatpush.msra.mxu0 %v234
    %265 = vmatpush.msra.mxu0 %v164
    %266 = vmatpush.msra.mxu0 %v162
    %267 = vmatpush.msra.mxu0 %v232
    %268 = vmatpush.msra.mxu0 %v230
    %269 = vmatmul.f32.gmra.mxu0 %v242
    %v270 = vpop.f32.mrf.mxu0
    %v271 = vadd.f32 %v210, %v270
    %272 = vmatmul.f32.gmra.mxu0 %v245
    %v273 = vpop.f32.mrf.mxu0
    %v274 = vadd.f32 %v215, %v273
    %275 = vmatmul.f32.gmra.mxu0 %v248
    %v276 = vpop.f32.mrf.mxu0
    %v277 = vadd.f32 %v220, %v276
    %278 = vmatmul.f32.gmra.mxu0 %v251
    %v279 = vpop.f32.mrf.mxu0
    %v280 = vadd.f32 %v225, %v279
    %281 = vdwg.mxu0
    %v282 = vmax.f32 %v271, 0.0
    %v283 = vmax.f32 %v274, 0.0
    %v284 = vmax.f32 %v277, 0.0
    %v285 = vmax.f32 %v280, 0.0
    %286 = vxpose.xlu0.b32.start [1/16] %v282, 128
    %287 = vxpose.xlu0.b32.cont [2/16] %v283, 128
    %288 = vxpose.xlu0.b32.cont [3/16] %v284, 128
    %289 = vxpose.xlu0.b32.cont [4/16] %v285, 128
    %290 = vxpose.xlu0.b32.cont [5/16] 0.0, 128
    %291 = vxpose.xlu0.b32.cont [6/16] 0.0, 128
    %292 = vxpose.xlu0.b32.cont [7/16] 0.0, 128
    %293 = vxpose.xlu0.b32.cont [8/16] 0.0, 128
    %294 = vxpose.xlu0.b32.cont [9/16] 0.0, 128
    %295 = vxpose.xlu0.b32.cont [10/16] 0.0, 128
    %296 = vxpose.xlu0.b32.cont [11/16] 0.0, 128
    %297 = vxpose.xlu0.b32.cont [12/16] 0.0, 128
    %298 = vxpose.xlu0.b32.cont [13/16] 0.0, 128
    %299 = vxpose.xlu0.b32.cont [14/16] 0.0, 128
    %300 = vxpose.xlu0.b32.cont [15/16] 0.0, 128
    %301 = vxpose.xlu0.b32.end [16/16] 0.0, 128
    %v302 = vpop.trf.xlu0
    %v303 = vpop.trf.xlu0
    %v304 = vpop.trf.xlu0
    %v305 = vpop.trf.xlu0
    %v306 = vpop.trf.xlu0
    %v307 = vpop.trf.xlu0
    %v308 = vpop.trf.xlu0
    %v309 = vpop.trf.xlu0
    %v310 = vpop.trf.xlu0
    %v311 = vpop.trf.xlu0
    %v312 = vpop.trf.xlu0
    %v313 = vpop.trf.xlu0
    %v314 = vpop.trf.xlu0
    %v315 = vpop.trf.xlu0
    %v316 = vpop.trf.xlu0
    %v317 = vpop.trf.xlu0
    %v318 = vld [vmem:[%s5] sm:$0xff]
    %v319 = vld [vmem:[%s5 + $0x8] sm:$0xff]
    %v320 = vmul.f32 %v302, %v318
    %v321 = vmul.f32 %v303, %v319
    %v322 = vmul.f32 %v304, %v318
    %v323 = vmul.f32 %v305, %v319
    %v324 = vmul.f32 %v306, %v318
    %v325 = vmul.f32 %v307, %v319
    %v326 = vmul.f32 %v308, %v318
    %v327 = vmul.f32 %v309, %v319
    %v328 = vsel %vm47, %v320, 0.0
    %v329 = vsel %vm47, %v321, 0.0
    %v330 = vadd.f32 %v328, %v329
    %v331 = vrot.slane %v330, 4
    %v332 = vadd.f32 %v330, %v331
    %v333 = vrot.slane %v332, 2
    %v334 = vadd.f32 %v332, %v333
    %v335 = vrot.slane %v334, 1
    %v336 = vadd.f32 %v334, %v335
    %v337 = vsel %vm47, %v322, 0.0
    %v338 = vsel %vm47, %v323, 0.0
    %v339 = vadd.f32 %v337, %v338
    %v340 = vrot.slane %v339, 4
    %v341 = vadd.f32 %v339, %v340
    %v342 = vrot.slane %v341, 2
    %v343 = vadd.f32 %v341, %v342
    %v344 = vrot.slane %v343, 1
    %v345 = vadd.f32 %v343, %v344
    %v346 = vsel %vm47, %v324, 0.0
    %v347 = vsel %vm47, %v325, 0.0
    %v348 = vadd.f32 %v346, %v347
    %v349 = vrot.slane %v348, 4
    %v350 = vadd.f32 %v348, %v349
    %v351 = vrot.slane %v350, 2
    %v352 = vadd.f32 %v350, %v351
    %v353 = vrot.slane %v352, 1
    %v354 = vadd.f32 %v352, %v353
    %v355 = vsel %vm47, %v326, 0.0
    %v356 = vsel %vm47, %v327, 0.0
    %v357 = vadd.f32 %v355, %v356
    %v358 = vrot.slane %v357, 4
    %v359 = vadd.f32 %v357, %v358
    %v360 = vrot.slane %v359, 2
    %v361 = vadd.f32 %v359, %v360
    %v362 = vrot.slane %v361, 1
    %v363 = vadd.f32 %v361, %v362
    %vm368 = vcmask 1041409
    %v369 = vsel %vm368, %v345, %v336
    %vm370 = vcmask 1042434
    %v371 = vsel %vm370, %v354, %v369
    %vm372 = vcmask 1043459
    %v373 = vsel %vm372, %v363, %v371
    %vm375 = vcmask 257024
    %v376 = vsel %vm375, %v373, 0.0
    %377 = vadd.xlane.f32.xlu0 %v376
    %v378 = vpop.xlane.xlu0 %377
    %v379 = vld [vmem:[#allocation2] sm:$0x1]
    %v381 = vperm.slane %v379, 0
    %v383 = vadd.f32 %v378, %v381
    %vm384 = vcmp.gt.f32.partialorder %v383, 20.0
    %v385 = vmin.f32 %v383, 20.0
    %v386 = vmul.f32 %v385, 1.442695
    %v387 = vpow.pop %v386
    %v388 = vadd.f32 %v387, 1.0
    %v389 = vlog2.pop %v388
    %v390 = vmul.f32 %v389, 0.6931472
    %v391 = vmul.f32 -0.5, %v387
    %v392 = vadd.f32 %v391, 1.0
    %v393 = vmul.f32 %v392, %v387
    %v394 = vand.u32 2147483647, %v387
    %vm395 = vcmp.lt.f32.partialorder %v394, 0.0004427343
    %v396 = vsel %vm395, %v393, %v390
    %v397 = vsel %vm384, %v383, %v396
    %398 = vxpose.xlu0.b32.start [1/16] %v397, 128
    %399 = vxpose.xlu0.b32.cont [2/16] 0.0, 128
    %400 = vxpose.xlu0.b32.cont [3/16] 0.0, 128
    %401 = vxpose.xlu0.b32.cont [4/16] 0.0, 128
    %402 = vxpose.xlu0.b32.cont [5/16] 0.0, 128
    %403 = vxpose.xlu0.b32.cont [6/16] 0.0, 128
    %404 = vxpose.xlu0.b32.cont [7/16] 0.0, 128
    %405 = vxpose.xlu0.b32.cont [8/16] 0.0, 128
    %406 = vxpose.xlu0.b32.cont [9/16] 0.0, 128
    %407 = vxpose.xlu0.b32.cont [10/16] 0.0, 128
    %408 = vxpose.xlu0.b32.cont [11/16] 0.0, 128
    %409 = vxpose.xlu0.b32.cont [12/16] 0.0, 128
    %410 = vxpose.xlu0.b32.cont [13/16] 0.0, 128
    %411 = vxpose.xlu0.b32.cont [14/16] 0.0, 128
    %412 = vxpose.xlu0.b32.cont [15/16] 0.0, 128
    %413 = vxpose.xlu0.b32.end [16/16] 0.0, 128
    %v414 = vpop.trf.xlu0
    %v415 = vpop.trf.xlu0
    %v416 = vpop.trf.xlu0
    %v417 = vpop.trf.xlu0
    %v418 = vpop.trf.xlu0
    %v419 = vpop.trf.xlu0
    %v420 = vpop.trf.xlu0
    %v421 = vpop.trf.xlu0
    %v422 = vpop.trf.xlu0
    %v423 = vpop.trf.xlu0
    %v424 = vpop.trf.xlu0
    %v425 = vpop.trf.xlu0
    %v426 = vpop.trf.xlu0
    %v427 = vpop.trf.xlu0
    %v428 = vpop.trf.xlu0
    %v429 = vpop.trf.xlu0
    %vm430 = vcmask 31744
    %v431 = vsel %vm430, %v414, 0.0
    %vm432 = vcmask 1040384
    %v433 = vsel %vm432, %v431, 0.0
    %434 = vst [vmem:[#allocation3] sm:$0xff] %v433
    // Predicated region
    $region30: #{tpu_custom_call.1} parent=1 // pred_check
      _
    $region31: #{tpu_custom_call.1} parent=1 // pred_check_branch
      %436 = sbr.rel (0) target = $region33
    $region32: #{tpu_custom_call.1} parent=1 // pred_region
      %438 = vsyncadd [#allocation4], 0
      %s440 = sshll.u32 [#allocation3], 4
      %s441 = int_to_ptr.vmem [resolvable:$true] %s440
      %s442 = sshll.u32 %s7, 4
      %s443 = int_to_ptr.hbm [resolvable:$true] %s442
      %445 = dma.vmem_to_hbm [thread:$0]  %s441, 128, %s443, [#allocation4]
    $region33: #{tpu_custom_call.1} parent=1 // pred_fallthru
      _
    // Predicated region
    $region34: #{tpu_custom_call.1} parent=1 // pred_check
      _
    $region35: #{tpu_custom_call.1} parent=1 // pred_check_branch
      %447 = sbr.rel (0) target = $region37
    $region36: #{tpu_custom_call.1} parent=1 // pred_region
      %449 = dma.done [#allocation4], 128
    $region37: #{tpu_custom_call.1} parent=1 // pred_fallthru
      _
    %450 = vsyncpa [#allocation4], 1

</llo_original>
